<compile_context>
chip_gen: v7x
topology: tpu7x:2x2x1
jax: 0.10.0
libtpu: 0.0.40
codegen_flags: <defaults>
</compile_context>

<pallas_src>
import functools
import math

import jax
import jax.numpy as jnp
from jax.experimental import pallas as pl
from jax.experimental.pallas import tpu as pltpu


def _dpw_kernel(x_ref, w_ref, b_ref, o_ref, *, k):
    # x_ref : (C_in, N_tile)   channel-major flat input, per-batch padded (lane-dense)
    # w_ref : (k, C_out, C_in) fused weights W[j, o, c] = wp[o, c] * wd[c, j]   (x dtype)
    # b_ref : (C_out, 1)       fused bias    wp @ bd + bp                        (f32)
    # o_ref : (C_out, N_tile)  lane-dense output slab
    x = x_ref[...]
    acc = jnp.dot(w_ref[0], x, preferred_element_type=jnp.float32)
    for j in range(1, k):
        # Output column q needs input column q + j.  The wrap-around of the last j columns
        # only lands in per-batch "garbage tail" columns (q >= b*S + L_out) which the wrapper
        # slices away, because S >= L_pad = L_out + k - 1.
        x_j = jnp.concatenate([x[:, j:], x[:, :j]], axis=1)
        acc = acc + jnp.dot(w_ref[j], x_j, preferred_element_type=jnp.float32)
    o_ref[...] = (acc + b_ref[...]).astype(o_ref.dtype)


def _vmem_capacity_bytes():
    try:
        return int(pltpu.get_tpu_info().vmem_capacity_bytes)
    except Exception:
        return 64 * 1024 * 1024   # conservative: v7x per-TensorCore physical VMEM


def _plan_tiles(B, L_pad, C_in, C_out, itemsize, budget_bytes):
    """Pick (segment length S, batches per block B_tile, padded batch count B_p).

    The kernel x block is (C_in, B_tile * S); Mosaic requires its last dim to either equal
    the full flat width (single block) or be a multiple of 128.
    """
    # Per flat column: double-buffered in/out blocks, one shifted copy of the input tile,
    # and the f32 accumulator / dot results.  Conservative on purpose.
    per_col = itemsize * (4 * C_in + 2 * C_out) + 8 * C_out
    full_cols = B * L_pad
    if full_cols * per_col <= budget_bytes:
        return L_pad, B, B                               # one block covering everything
    cap_cols = max(1, budget_bytes // per_col)
    g = 128 // math.gcd(L_pad, 128)                      # batches/block so B_tile*L_pad % 128 == 0
    if g * L_pad <= cap_cols:
        S = L_pad
        B_tile = (cap_cols // L_pad) // g * g
        B_tile = min(B_tile, -(-B // g) * g)             # don't exceed B rounded up to g
    else:
        # Segment granule too coarse for the budget: pad each batch segment to a
        # lane-aligned length so any B_tile works.
        # TODO(synk): for huge C_in*L_pad that overflows even one segment, halo-tile L
        # (overlap k-1 columns) instead of overflowing the VMEM budget.
        S = -(-L_pad // 128) * 128
        B_tile = max(1, min(cap_cols // S, B))
    B_p = -(-B // B_tile) * B_tile
    return S, B_tile, B_p


def depth_pointwise_conv1d(x, wd, bd, wp, bp, k, *, block_budget_bytes=None):
    """Forward pass of Depth_Pointwise_Conv1d.

    x : (B, C_in, L)      input
    wd: (C_in, 1, k)      depthwise weight (ignored if k == 1)
    bd: (C_in,)           depthwise bias   (ignored if k == 1)
    wp: (C_out, C_in, 1)  pointwise (1x1) weight
    bp: (C_out,)          pointwise bias
    """
    B, C_in, L = x.shape
    C_out = wp.shape[0]
    pad = k // 2
    L_pad = L + 2 * pad
    L_out = L_pad - k + 1

    # ---- fold depthwise into pointwise (in f32 for accuracy), run the MXU in x.dtype ----
    wp2 = wp.reshape(C_out, C_in).astype(jnp.float32)
    bp2 = bp.reshape(C_out, 1).astype(jnp.float32)
    if k == 1:
        w = wp2.reshape(1, C_out, C_in)                               # Identity depthwise
        b = bp2
    else:
        wd2 = wd.reshape(C_in, k).astype(jnp.float32)
        w = wp2[None, :, :] * jnp.transpose(wd2)[:, None, :]          # (k, C_out, C_in)
        b = wp2 @ bd.reshape(C_in, 1).astype(jnp.float32) + bp2       # (C_out, 1)
    w = w.astype(x.dtype)

    # ---- per-chip VMEM budget ----
    itemsize = jnp.dtype(x.dtype).itemsize
    phys = _vmem_capacity_bytes()
    vmem_limit = min(phys // 2 + phys // 4, 80 * 1024 * 1024)         # 48 MiB v7x, 80 MiB v5e/v6e
    if block_budget_bytes is None:
        block_budget_bytes = vmem_limit // 2
    w_bytes = 2 * (w.size * w.dtype.itemsize + b.size * 4)            # dbl-buffered weights + bias
    budget = max(block_budget_bytes - w_bytes, 1)

    S, B_tile, B_p = _plan_tiles(B, L_pad, C_in, C_out, itemsize, budget)
    N_tile = B_tile * S

    # ---- channel-major flat layout with per-batch zero halos (XLA layout plumbing) ----
    xp = jnp.pad(x, ((0, B_p - B), (0, 0), (pad, pad + (S - L_pad))))  # (B_p, C_in, S)
    x_flat = jnp.transpose(xp, (1, 0, 2)).reshape(C_in, B_p * S)

    kernel = functools.partial(_dpw_kernel, k=k)
    flops = 2 * B * C_out * C_in * k * L_out
    bytes_accessed = (x.size + B * C_out * L_out) * itemsize + w.size * w.dtype.itemsize

    out_flat = pl.pallas_call(
        kernel,
        out_shape=jax.ShapeDtypeStruct((C_out, B_p * S), x.dtype),
        grid_spec=pltpu.PrefetchScalarGridSpec(
            num_scalar_prefetch=0,
            grid=(B_p // B_tile,),
            in_specs=[
                pl.BlockSpec((C_in, N_tile), lambda i: (0, i)),
                pl.BlockSpec((k, C_out, C_in), lambda i: (0, 0, 0)),
                pl.BlockSpec((C_out, 1), lambda i: (0, 0)),
            ],
            out_specs=pl.BlockSpec((C_out, N_tile), lambda i: (0, i)),
        ),
        compiler_params=pltpu.CompilerParams(
            dimension_semantics=("parallel",),
            vmem_limit_bytes=vmem_limit,
        ),
        cost_estimate=pl.CostEstimate(flops=flops, transcendentals=0,
                                      bytes_accessed=bytes_accessed),
    )(x_flat, w, b)

    # Un-flatten: drop padded batches and per-batch garbage tail columns.
    out = out_flat.reshape(C_out, B_p, S)[:, :B, :L_out]
    return jnp.transpose(out, (1, 0, 2))                              # (B, C_out, L_out)


def _reference(x, wd, bd, wp, bp, k):
    # Pure-JAX reference matching PyTorch semantics (computed in f32).
    x = x.astype(jnp.float32)
    B, C_in, L = x.shape
    pad = k // 2
    L_out = L + 2 * pad - k + 1
    if k == 1:
        dw = x
    else:
        xp = jnp.pad(x, ((0, 0), (0, 0), (pad, pad)))
        dw = jnp.zeros((B, C_in, L_out), jnp.float32)
        for j in range(k):
            dw = dw + xp[:, :, j:j + L_out] * wd[:, 0, j].astype(jnp.float32)[None, :, None]
        dw = dw + bd.astype(jnp.float32)[None, :, None]
    out = (jnp.einsum('oc,bcl->bol', wp[:, :, 0].astype(jnp.float32), dw)
           + bp.astype(jnp.float32)[None, :, None])
    return out


if __name__ == "__main__":
    key = jax.random.PRNGKey(0)

    def run_case(B, C_in, C_out, L, k, case_key, dtype=jnp.float32,
                 block_budget_bytes=None, atol=1e-4, rtol=1e-4):
        kx, kwd, kbd, kwp, kbp = jax.random.split(case_key, 5)
        x = jax.random.normal(kx, (B, C_in, L), jnp.float32).astype(dtype)
        wd = jax.random.normal(kwd, (C_in, 1, k), jnp.float32) * 0.1
        bd = jax.random.normal(kbd, (C_in,), jnp.float32) * 0.1
        wp = jax.random.normal(kwp, (C_out, C_in, 1), jnp.float32) * 0.1
        bp = jax.random.normal(kbp, (C_out,), jnp.float32) * 0.1

        out = jax.block_until_ready(depth_pointwise_conv1d(
            x, wd.astype(dtype), bd.astype(dtype), wp.astype(dtype), bp.astype(dtype), k,
            block_budget_bytes=block_budget_bytes))
        ref = _reference(x, wd, bd, wp, bp, k)

        pad = k // 2
        L_out = L + 2 * pad - k + 1
        assert out.shape == (B, C_out, L_out), out.shape
        assert jnp.allclose(out.astype(jnp.float32), ref, atol=atol, rtol=rtol), \
            f"mismatch (k={k}, dtype={dtype}, budget={block_budget_bytes})"

    k1, k2, k3, k4, k5 = jax.random.split(key, 5)
    run_case(2, 4, 8, 16, 3, k1)                            # odd k: depthwise + pointwise
    run_case(2, 4, 8, 16, 1, k2)                            # k == 1: Identity depthwise
    run_case(3, 4, 8, 16, 4, k3)                            # even k, odd B: L_out = L + 1
    run_case(2, 4, 8, 16, 3, k4, block_budget_bytes=4096)   # force the multi-block grid path
    run_case(2, 4, 8, 16, 3, k5, dtype=jnp.bfloat16,        # bf16 MXU path
             atol=3e-2, rtol=3e-2)

    print("KERNEL_OK")
</pallas_src>

<mosaic_0001>
module attributes {stable_mosaic.version = 11 : i64} {
  func.func @_dpw_kernel(%arg0: i32, %arg1: memref<4x36xf32, #tpu.memory_space<vmem>>, %arg2: memref<3x8x4xf32, #tpu.memory_space<vmem>>, %arg3: memref<8x1xf32, #tpu.memory_space<vmem>>, %arg4: memref<8x36xf32, #tpu.memory_space<vmem>>) attributes {dimension_semantics = [#tpu.dimension_semantics<parallel>], iteration_bounds = array<i64: 1>, scalar_prefetch = 0 : i64, scratch_operands = 0 : i64, tpu.core_type = #tpu.core_type<tc>, window_params = [{transform_indices = @transform_0, window_bounds = array<i64: 4, 36>}, {pipeline_mode = #tpu.pipeline_mode<synchronous>, transform_indices = @transform_1, window_bounds = array<i64: 3, 8, 4>}, {pipeline_mode = #tpu.pipeline_mode<synchronous>, transform_indices = @transform_2, window_bounds = array<i64: 8, 1>}, {transform_indices = @transform_3, window_bounds = array<i64: 8, 36>}]} {
    %c0 = arith.constant 0 : index
    %c0_0 = arith.constant 0 : index
    %0 = vector.load %arg1[%c0, %c0_0] : memref<4x36xf32, #tpu.memory_space<vmem>>, vector<4x36xf32>
    %c0_1 = arith.constant 0 : index
    %c0_2 = arith.constant 0 : index
    %c0_3 = arith.constant 0 : index
    %1 = vector.load %arg2[%c0_1, %c0_2, %c0_3] : memref<3x8x4xf32, #tpu.memory_space<vmem>>, vector<1x8x4xf32>
    %2 = vector.shape_cast %1 : vector<1x8x4xf32> to vector<8x4xf32>
    %cst = arith.constant dense<0.000000e+00> : vector<8x36xf32>
    %3 = tpu.matmul %2, %0, %cst {dimension_numbers = #tpu.dot_dimension_numbers<[1], [0], [0], [1], [0, 0, 1, 1], [], []>} : vector<8x4xf32>, vector<4x36xf32>, vector<8x36xf32> -> vector<8x36xf32>
    %4 = vector.extract_strided_slice %0 {offsets = [0, 1], sizes = [4, 35], strides = [1, 1]} : vector<4x36xf32> to vector<4x35xf32>
    %5 = vector.extract_strided_slice %0 {offsets = [0, 0], sizes = [4, 1], strides = [1, 1]} : vector<4x36xf32> to vector<4x1xf32>
    %6 = tpu.concatenate %4, %5 in 1 : vector<4x35xf32>, vector<4x1xf32> -> vector<4x36xf32>
    %c1 = arith.constant 1 : index
    %c0_4 = arith.constant 0 : index
    %c0_5 = arith.constant 0 : index
    %7 = vector.load %arg2[%c1, %c0_4, %c0_5] : memref<3x8x4xf32, #tpu.memory_space<vmem>>, vector<1x8x4xf32>
    %8 = vector.shape_cast %7 : vector<1x8x4xf32> to vector<8x4xf32>
    %cst_6 = arith.constant dense<0.000000e+00> : vector<8x36xf32>
    %9 = tpu.matmul %8, %6, %cst_6 {dimension_numbers = #tpu.dot_dimension_numbers<[1], [0], [0], [1], [0, 0, 1, 1], [], []>} : vector<8x4xf32>, vector<4x36xf32>, vector<8x36xf32> -> vector<8x36xf32>
    %10 = arith.addf %3, %9 : vector<8x36xf32>
    %11 = vector.extract_strided_slice %0 {offsets = [0, 2], sizes = [4, 34], strides = [1, 1]} : vector<4x36xf32> to vector<4x34xf32>
    %12 = vector.extract_strided_slice %0 {offsets = [0, 0], sizes = [4, 2], strides = [1, 1]} : vector<4x36xf32> to vector<4x2xf32>
    %13 = tpu.concatenate %11, %12 in 1 : vector<4x34xf32>, vector<4x2xf32> -> vector<4x36xf32>
    %c2 = arith.constant 2 : index
    %c0_7 = arith.constant 0 : index
    %c0_8 = arith.constant 0 : index
    %14 = vector.load %arg2[%c2, %c0_7, %c0_8] : memref<3x8x4xf32, #tpu.memory_space<vmem>>, vector<1x8x4xf32>
    %15 = vector.shape_cast %14 : vector<1x8x4xf32> to vector<8x4xf32>
    %cst_9 = arith.constant dense<0.000000e+00> : vector<8x36xf32>
    %16 = tpu.matmul %15, %13, %cst_9 {dimension_numbers = #tpu.dot_dimension_numbers<[1], [0], [0], [1], [0, 0, 1, 1], [], []>} : vector<8x4xf32>, vector<4x36xf32>, vector<8x36xf32> -> vector<8x36xf32>
    %17 = arith.addf %10, %16 : vector<8x36xf32>
    %c0_10 = arith.constant 0 : index
    %c0_11 = arith.constant 0 : index
    %18 = vector.load %arg3[%c0_10, %c0_11] : memref<8x1xf32, #tpu.memory_space<vmem>>, vector<8x1xf32>
    %19 = vector.broadcast %18 : vector<8x1xf32> to vector<8x36xf32>
    %20 = arith.addf %17, %19 : vector<8x36xf32>
    %c0_12 = arith.constant 0 : index
    %c0_13 = arith.constant 0 : index
    %21 = vector.load %arg4[%c0_12, %c0_13] : memref<8x36xf32, #tpu.memory_space<vmem>>, vector<8x36xf32>
    tpu.vector_store %arg4[%c0_12, %c0_13], %20 {strides = array<i32>} : memref<8x36xf32, #tpu.memory_space<vmem>>, vector<8x36xf32>,
    return
  }
  func.func @transform_0(%arg0: i32) -> (i32, i32) {
    %c0_i32 = arith.constant 0 : i32
    %c0_i32_0 = arith.constant 0 : i32
    return %c0_i32, %arg0 : i32, i32
  }
  func.func @transform_1(%arg0: i32) -> (i32, i32, i32) {
    %c0_i32 = arith.constant 0 : i32
    %c0_i32_0 = arith.constant 0 : i32
    %c0_i32_1 = arith.constant 0 : i32
    %c0_i32_2 = arith.constant 0 : i32
    return %c0_i32, %c0_i32_0, %c0_i32_1 : i32, i32, i32
  }
  func.func @transform_2(%arg0: i32) -> (i32, i32) {
    %c0_i32 = arith.constant 0 : i32
    %c0_i32_0 = arith.constant 0 : i32
    %c0_i32_1 = arith.constant 0 : i32
    return %c0_i32, %c0_i32_0 : i32, i32
  }
  func.func @transform_3(%arg0: i32) -> (i32, i32) {
    %c0_i32 = arith.constant 0 : i32
    %c0_i32_0 = arith.constant 0 : i32
    return %c0_i32, %arg0 : i32, i32
  }
}

</mosaic_0001>

<llo_original>
// kernel: tpu_custom_call.1
$region0: #{tpu_custom_call.1}
  #allocation0 [shape = 'u32[]', space=smem, size = 0x4, offset = 0x4, fixed_abs, tag = 'smem constant byte address 0x4 - core index']
  #allocation1 [shape = 'u32[144,128]{1,0:T(1,128)}', space=vmem, size = 0x12000, scoped, tag = 'internal scratch']
  %s0 = inlined_call_operand.vmem [shape: f32[4,36], index: 0, kind: input, shape index: {}]
  %s1 = inlined_call_operand.vmem [shape: f32[3,8,4], index: 1, kind: input, shape index: {}]
  %s2 = inlined_call_operand.vmem [shape: f32[8,1], index: 2, kind: input, shape index: {}]
  %s3 = inlined_call_operand.hbm [shape: f32[8,36], index: 3, kind: output, shape index: {}]
  %s4 = sld [smem:[#allocation0]]
  $region22: #{tpu_custom_call.1} parent=0
    _
  %s6 = ssub.s32 1, %s4
  %s7 = scalar_select 0, %s6, %s4
  $region1: #{tpu_custom_call.1} parent=0
    #allocation2 [shape = 'u8[4096]{0}', space=vmem, size = 0x1000, scoped, tag = 'output window, operand 0, single buffered']
    #allocation3 [shape = 's32[1]{0}', space=sflag, size = 0x4, scoped, tag = 'scoped memory for tpu_custom_call.1']
    %8 = vsyncpa [#allocation3], 0
    // Predicated region
    $region2: #{tpu_custom_call.1} parent=1 // pred_check
      _
    $region3: #{tpu_custom_call.1} parent=1 // pred_check_branch
      %10 = sbr.rel (0) target = $region5
    $region4: #{tpu_custom_call.1} parent=1 // pred_region
      _
    $region5: #{tpu_custom_call.1} parent=1 // pred_fallthru
      _
    // Predicated region
    $region6: #{tpu_custom_call.1} parent=1 // pred_check
      _
    $region7: #{tpu_custom_call.1} parent=1 // pred_check_branch
      %12 = sbr.rel (0) target = $region9
    $region8: #{tpu_custom_call.1} parent=1 // pred_region
      _
    $region9: #{tpu_custom_call.1} parent=1 // pred_fallthru
      _
    // Predicated region
    $region10: #{tpu_custom_call.1} parent=1 // pred_check
      _
    $region11: #{tpu_custom_call.1} parent=1 // pred_check_branch
      %14 = sbr.rel (0) target = $region13
    $region12: #{tpu_custom_call.1} parent=1 // pred_region
      _
    $region13: #{tpu_custom_call.1} parent=1 // pred_fallthru
      _
    %v15 = vld [vmem:[%s0] sm:$0xf]
    %v16 = vld [vmem:[%s1] sm:$0xff]
    %18 = vrot.lane.b32.xlu0 %v15, 127
    %v19 = vpop.permute.xlu0 %18
    %21 = vrot.lane.b32.xlu0 %v15, 35
    %v22 = vpop.permute.xlu0 %21
    %vm24 = vcmask 285696
    %v25 = vsel %vm24, %v19, %v22
    %s26 = scalar_lea.vmem %s1, 8
    %v27 = vld [vmem:[%s26] sm:$0xff]
    %vm28 = vcmask 31744
    %v30 = vsel %vm28, %v27, 0
    %vm32 = vcmask 1043456
    %v34 = vsel %vm32, %v25, 0
    %36 = vmatprep.subr.mxu0 0.0
    %37 = vmatpush1.msra.mxu0 %v34
    %38 = vmatprep.subr.mxu0 0.0
    %39 = vmatpush1.msra.mxu0 0.0
    %40 = vmatprep.subr.mxu0 0.0
    %41 = vmatpush1.msra.mxu0 0.0
    %42 = vmatprep.subr.mxu0 0.0
    %43 = vmatpush1.msra.mxu0 0.0
    %44 = vmatprep.subr.mxu0 0.0
    %45 = vmatpush1.msra.mxu0 0.0
    %46 = vmatprep.subr.mxu0 0.0
    %47 = vmatpush1.msra.mxu0 0.0
    %48 = vmatprep.subr.mxu0 0.0
    %49 = vmatpush1.msra.mxu0 0.0
    %50 = vmatprep.subr.mxu0 0.0
    %51 = vmatpush1.msra.mxu0 0.0
    %52 = vmatprep.subr.mxu0 0.0
    %53 = vmatpush1.msra.mxu0 0.0
    %54 = vmatprep.subr.mxu0 0.0
    %55 = vmatpush1.msra.mxu0 0.0
    %56 = vmatprep.subr.mxu0 0.0
    %57 = vmatpush1.msra.mxu0 0.0
    %58 = vmatprep.subr.mxu0 0.0
    %59 = vmatpush1.msra.mxu0 0.0
    %60 = vmatprep.subr.mxu0 0.0
    %61 = vmatpush1.msra.mxu0 0.0
    %62 = vmatprep.subr.mxu0 0.0
    %63 = vmatpush1.msra.mxu0 0.0
    %64 = vmatprep.subr.mxu0 0.0
    %65 = vmatpush1.msra.mxu0 0.0
    %66 = vmatprep.subr.mxu0 0.0
    %67 = vmatpush1.msra.mxu0 0.0
    %68 = vmatprep.subr.mxu0 0.0
    %69 = vmatpush1.msra.mxu0 0.0
    %70 = vmatprep.subr.mxu0 0.0
    %71 = vmatpush1.msra.mxu0 0.0
    %72 = vmatprep.subr.mxu0 0.0
    %73 = vmatpush1.msra.mxu0 0.0
    %74 = vmatprep.subr.mxu0 0.0
    %75 = vmatpush1.msra.mxu0 0.0
    %76 = vmatprep.subr.mxu0 0.0
    %77 = vmatpush1.msra.mxu0 0.0
    %78 = vmatprep.subr.mxu0 0.0
    %79 = vmatpush1.msra.mxu0 0.0
    %80 = vmatprep.subr.mxu0 0.0
    %81 = vmatpush1.msra.mxu0 0.0
    %82 = vmatprep.subr.mxu0 0.0
    %83 = vmatpush1.msra.mxu0 0.0
    %84 = vmatprep.subr.mxu0 0.0
    %85 = vmatpush1.msra.mxu0 0.0
    %86 = vmatprep.subr.mxu0 0.0
    %87 = vmatpush1.msra.mxu0 0.0
    %88 = vmatprep.subr.mxu0 0.0
    %89 = vmatpush1.msra.mxu0 0.0
    %90 = vmatprep.subr.mxu0 0.0
    %91 = vmatpush1.msra.mxu0 0.0
    %92 = vmatprep.subr.mxu0 0.0
    %93 = vmatpush1.msra.mxu0 0.0
    %94 = vmatprep.subr.mxu0 0.0
    %95 = vmatpush1.msra.mxu0 0.0
    %96 = vmatprep.subr.mxu0 0.0
    %97 = vmatpush1.msra.mxu0 0.0
    %98 = vmatprep.subr.mxu0 0.0
    %99 = vmatpush1.msra.mxu0 0.0
    %100 = vmatprep.mubr.f32.mxu0 0.0
    %101 = vmatmul.mubr.f32.gmra.mrb[0].mxu0 %v30
    %v102 = vpop.f32.mrb[0].mxu0
    %v103 = vadd.f32 0.0, %v102
    %v104 = vpop.f32.mrb[0].mxu0
    %105 = vdwg.mxu0
    %v107 = vsel %vm28, %v16, 0
    %v109 = vsel %vm32, %v15, 0
    %111 = vmatprep.subr.mxu0 0.0
    %112 = vmatpush1.msra.mxu0 %v109
    %113 = vmatprep.subr.mxu0 0.0
    %114 = vmatpush1.msra.mxu0 0.0
    %115 = vmatprep.subr.mxu0 0.0
    %116 = vmatpush1.msra.mxu0 0.0
    %117 = vmatprep.subr.mxu0 0.0
    %118 = vmatpush1.msra.mxu0 0.0
    %119 = vmatprep.subr.mxu0 0.0
    %120 = vmatpush1.msra.mxu0 0.0
    %121 = vmatprep.subr.mxu0 0.0
    %122 = vmatpush1.msra.mxu0 0.0
    %123 = vmatprep.subr.mxu0 0.0
    %124 = vmatpush1.msra.mxu0 0.0
    %125 = vmatprep.subr.mxu0 0.0
    %126 = vmatpush1.msra.mxu0 0.0
    %127 = vmatprep.subr.mxu0 0.0
    %128 = vmatpush1.msra.mxu0 0.0
    %129 = vmatprep.subr.mxu0 0.0
    %130 = vmatpush1.msra.mxu0 0.0
    %131 = vmatprep.subr.mxu0 0.0
    %132 = vmatpush1.msra.mxu0 0.0
    %133 = vmatprep.subr.mxu0 0.0
    %134 = vmatpush1.msra.mxu0 0.0
    %135 = vmatprep.subr.mxu0 0.0
    %136 = vmatpush1.msra.mxu0 0.0
    %137 = vmatprep.subr.mxu0 0.0
    %138 = vmatpush1.msra.mxu0 0.0
    %139 = vmatprep.subr.mxu0 0.0
    %140 = vmatpush1.msra.mxu0 0.0
    %141 = vmatprep.subr.mxu0 0.0
    %142 = vmatpush1.msra.mxu0 0.0
    %143 = vmatprep.subr.mxu0 0.0
    %144 = vmatpush1.msra.mxu0 0.0
    %145 = vmatprep.subr.mxu0 0.0
    %146 = vmatpush1.msra.mxu0 0.0
    %147 = vmatprep.subr.mxu0 0.0
    %148 = vmatpush1.msra.mxu0 0.0
    %149 = vmatprep.subr.mxu0 0.0
    %150 = vmatpush1.msra.mxu0 0.0
    %151 = vmatprep.subr.mxu0 0.0
    %152 = vmatpush1.msra.mxu0 0.0
    %153 = vmatprep.subr.mxu0 0.0
    %154 = vmatpush1.msra.mxu0 0.0
    %155 = vmatprep.subr.mxu0 0.0
    %156 = vmatpush1.msra.mxu0 0.0
    %157 = vmatprep.subr.mxu0 0.0
    %158 = vmatpush1.msra.mxu0 0.0
    %159 = vmatprep.subr.mxu0 0.0
    %160 = vmatpush1.msra.mxu0 0.0
    %161 = vmatprep.subr.mxu0 0.0
    %162 = vmatpush1.msra.mxu0 0.0
    %163 = vmatprep.subr.mxu0 0.0
    %164 = vmatpush1.msra.mxu0 0.0
    %165 = vmatprep.subr.mxu0 0.0
    %166 = vmatpush1.msra.mxu0 0.0
    %167 = vmatprep.subr.mxu0 0.0
    %168 = vmatpush1.msra.mxu0 0.0
    %169 = vmatprep.subr.mxu0 0.0
    %170 = vmatpush1.msra.mxu0 0.0
    %171 = vmatprep.subr.mxu0 0.0
    %172 = vmatpush1.msra.mxu0 0.0
    %173 = vmatprep.subr.mxu0 0.0
    %174 = vmatpush1.msra.mxu0 0.0
    %175 = vmatprep.mubr.f32.mxu0 0.0
    %176 = vmatmul.mubr.f32.gmra.mrb[0].mxu0 %v107
    %v177 = vpop.f32.mrb[0].mxu0
    %v178 = vadd.f32 %v103, %v177
    %v179 = vpop.f32.mrb[0].mxu0
    %180 = vdwg.mxu0
    %181 = vrot.lane.b32.xlu0 %v15, 126
    %v182 = vpop.permute.xlu0 %181
    %184 = vrot.lane.b32.xlu0 %v15, 34
    %v185 = vpop.permute.xlu0 %184
    %vm187 = vcmask 277504
    %v188 = vsel %vm187, %v182, %v185
    %s189 = scalar_lea.vmem %s1, 16
    %v190 = vld [vmem:[%s189] sm:$0xff]
    %v192 = vsel %vm28, %v190, 0
    %v195 = vsel %vm32, %v188, 0
    %197 = vmatprep.subr.mxu0 0.0
    %198 = vmatpush1.msra.mxu0 %v195
    %199 = vmatprep.subr.mxu0 0.0
    %200 = vmatpush1.msra.mxu0 0.0
    %201 = vmatprep.subr.mxu0 0.0
    %202 = vmatpush1.msra.mxu0 0.0
    %203 = vmatprep.subr.mxu0 0.0
    %204 = vmatpush1.msra.mxu0 0.0
    %205 = vmatprep.subr.mxu0 0.0
    %206 = vmatpush1.msra.mxu0 0.0
    %207 = vmatprep.subr.mxu0 0.0
    %208 = vmatpush1.msra.mxu0 0.0
    %209 = vmatprep.subr.mxu0 0.0
    %210 = vmatpush1.msra.mxu0 0.0
    %211 = vmatprep.subr.mxu0 0.0
    %212 = vmatpush1.msra.mxu0 0.0
    %213 = vmatprep.subr.mxu0 0.0
    %214 = vmatpush1.msra.mxu0 0.0
    %215 = vmatprep.subr.mxu0 0.0
    %216 = vmatpush1.msra.mxu0 0.0
    %217 = vmatprep.subr.mxu0 0.0
    %218 = vmatpush1.msra.mxu0 0.0
    %219 = vmatprep.subr.mxu0 0.0
    %220 = vmatpush1.msra.mxu0 0.0
    %221 = vmatprep.subr.mxu0 0.0
    %222 = vmatpush1.msra.mxu0 0.0
    %223 = vmatprep.subr.mxu0 0.0
    %224 = vmatpush1.msra.mxu0 0.0
    %225 = vmatprep.subr.mxu0 0.0
    %226 = vmatpush1.msra.mxu0 0.0
    %227 = vmatprep.subr.mxu0 0.0
    %228 = vmatpush1.msra.mxu0 0.0
    %229 = vmatprep.subr.mxu0 0.0
    %230 = vmatpush1.msra.mxu0 0.0
    %231 = vmatprep.subr.mxu0 0.0
    %232 = vmatpush1.msra.mxu0 0.0
    %233 = vmatprep.subr.mxu0 0.0
    %234 = vmatpush1.msra.mxu0 0.0
    %235 = vmatprep.subr.mxu0 0.0
    %236 = vmatpush1.msra.mxu0 0.0
    %237 = vmatprep.subr.mxu0 0.0
    %238 = vmatpush1.msra.mxu0 0.0
    %239 = vmatprep.subr.mxu0 0.0
    %240 = vmatpush1.msra.mxu0 0.0
    %241 = vmatprep.subr.mxu0 0.0
    %242 = vmatpush1.msra.mxu0 0.0
    %243 = vmatprep.subr.mxu0 0.0
    %244 = vmatpush1.msra.mxu0 0.0
    %245 = vmatprep.subr.mxu0 0.0
    %246 = vmatpush1.msra.mxu0 0.0
    %247 = vmatprep.subr.mxu0 0.0
    %248 = vmatpush1.msra.mxu0 0.0
    %249 = vmatprep.subr.mxu0 0.0
    %250 = vmatpush1.msra.mxu0 0.0
    %251 = vmatprep.subr.mxu0 0.0
    %252 = vmatpush1.msra.mxu0 0.0
    %253 = vmatprep.subr.mxu0 0.0
    %254 = vmatpush1.msra.mxu0 0.0
    %255 = vmatprep.subr.mxu0 0.0
    %256 = vmatpush1.msra.mxu0 0.0
    %257 = vmatprep.subr.mxu0 0.0
    %258 = vmatpush1.msra.mxu0 0.0
    %259 = vmatprep.subr.mxu0 0.0
    %260 = vmatpush1.msra.mxu0 0.0
    %261 = vmatprep.mubr.f32.mxu0 0.0
    %262 = vmatmul.mubr.f32.gmra.mrb[0].mxu0 %v192
    %v263 = vpop.f32.mrb[0].mxu0
    %v264 = vadd.f32 0.0, %v263
    %v265 = vpop.f32.mrb[0].mxu0
    %266 = vdwg.mxu0
    %v267 = vadd.f32 %v178, %v264
    %v268 = vld [vmem:[%s2] sm:$0xff]
    %270 = vset.pattern.permute.xlu0 0
    %271 = vperm.xlu0 %270, %v268
    %v272 = vpop.permute.xlu0 %271
    %v274 = vadd.f32 %v267, %v272
    %vm275 = vcmask 293888
    %276 = vst.msk [vmem:[#allocation2] sm:$0xff] %vm275, %v274
    // Predicated region
    $region14: #{tpu_custom_call.1} parent=1 // pred_check
      _
    $region15: #{tpu_custom_call.1} parent=1 // pred_check_branch
      %278 = sbr.rel (0) target = $region17
    $region16: #{tpu_custom_call.1} parent=1 // pred_region
      %s280 = ssub.s32 128, 128
      %281 = vsyncadd [#allocation3], %s280
      %s283 = sshll.u32 [#allocation2], 4
      %s284 = int_to_ptr.vmem [resolvable:$true] %s283
      %286 = dma.vmem_to_hbm [thread:$0]  %s284, 128, %s3, [#allocation3]
    $region17: #{tpu_custom_call.1} parent=1 // pred_fallthru
      _
    // Predicated region
    $region18: #{tpu_custom_call.1} parent=1 // pred_check
      _
    $region19: #{tpu_custom_call.1} parent=1 // pred_check_branch
      %288 = sbr.rel (0) target = $region21
    $region20: #{tpu_custom_call.1} parent=1 // pred_region
      %289 = dma.done [#allocation3], 128
    $region21: #{tpu_custom_call.1} parent=1 // pred_fallthru
      _
    %290 = vsyncpa [#allocation3], 1

</llo_original>
